<compile_context>
chip_gen: v6e
topology: v6e:2x2x1
jax: 0.10.0
libtpu: 0.0.40
codegen_flags: <defaults>
</compile_context>

<pallas_src>
import math
import functools

import jax
import jax.numpy as jnp
from jax import lax
from jax.experimental import pallas as pl
from jax.experimental.pallas import tpu as pltpu


def _hash_u32(x):
    """lowbias32-style mixer: uniform uint32 stream from a uint32 counter."""
    x = x ^ (x >> 16)
    x = x * jnp.uint32(0x7FEB352D)
    x = x ^ (x >> 15)
    x = x * jnp.uint32(0x846CA68B)
    x = x ^ (x >> 16)
    return x


def _pos_enc_kernel(seed_ref, pe_ref, embed_ref, out_ref, *,
                    scale, dropout_p, training, rows_per_batch, compute_dtype):
    # embed_ref / out_ref: (TS, W) row tile; pe_ref: (TS, W) or (1, W) (broadcast).
    x = embed_ref[...].astype(compute_dtype) * scale
    x = x + pe_ref[...].astype(compute_dtype)

    if training and dropout_p > 0.0:
        if dropout_p >= 1.0:
            x = jnp.zeros_like(x)
        else:
            # Inverted dropout (nn.Dropout training mode).  Counter-based hash of the
            # global element index -> tiling-independent mask, only a few VALU int ops
            # per vreg (hidden under DMA), no pltpu.prng_* (portable to interpret mode).
            ts, w = out_ref.shape
            row0 = pl.program_id(1) * rows_per_batch + pl.program_id(0) * ts
            rows = lax.broadcasted_iota(jnp.int32, (ts, w), 0) + row0
            cols = lax.broadcasted_iota(jnp.int32, (ts, w), 1)
            flat = rows.astype(jnp.uint32) * jnp.uint32(w) + cols.astype(jnp.uint32)
            seed_mix = _hash_u32(seed_ref[0].astype(jnp.uint32))
            u = _hash_u32(flat ^ seed_mix)
            # drop  <=>  u < round(p * 2^32)   (single unsigned compare, no float cvt)
            thresh = jnp.uint32(min(int(round(dropout_p * (1 << 32))), (1 << 32) - 1))
            keep = u >= thresh
            x = jnp.where(keep, x * (1.0 / (1.0 - dropout_p)), 0.0)

    out_ref[...] = x.astype(out_ref.dtype)


def make_pe(maxlen, dim):
    """Sinusoidal positional-encoding buffer, shape (maxlen, dim), f32."""
    position = jnp.arange(maxlen, dtype=jnp.float32)[:, None]
    divterm = jnp.exp(
        jnp.arange(0, dim, 2, dtype=jnp.float32) * (-math.log(10000.0) / dim)
    )
    pe = jnp.zeros((maxlen, dim), dtype=jnp.float32)
    pe = pe.at[:, 0::2].set(jnp.sin(position * divterm))
    pe = pe.at[:, 1::2].set(jnp.cos(position * divterm))
    return pe


def _choose_fold(dim, rows):
    """Fold factor f for the contiguous (rows, dim) -> (rows/f, dim*f) reshape.
    Targets a minor dim that is a multiple of 128; a partial fold (divisor of rows)
    still widens stores/DMA when the full fold doesn't divide `rows`."""
    if dim % 128 == 0:
        return 1
    want = 128 // math.gcd(dim, 128)
    if rows % want == 0:
        return want
    best = 1
    for f in range(2, want):
        if rows % f == 0:
            best = f
    return best


def _choose_row_tile(rows, row_bytes, pack, target_bytes):
    """Fixed near-target, sublane-aligned row tile.  The grid uses cdiv, so a ragged
    last tile is simply masked — awkward row counts never collapse to tiny tiles."""
    target_rows = max(1, target_bytes // max(row_bytes, 1))
    if rows <= max(pack, target_rows):
        return rows                                   # single full-extent block (legal)
    ts = max(pack, (target_rows // pack) * pack)
    return min(ts, (rows // pack) * pack)


def _vmem_budget():
    """Generation-aware (block_target_bytes, vmem_limit_cap)."""
    try:
        cap = int(pltpu.get_tpu_info().vmem_capacity_bytes)
    except Exception:
        cap = None
    if cap is not None and cap >= (100 << 20):        # v5e / v6e: 128 MiB VMEM
        return 8 << 20, 96 << 20
    return 5 << 20, 48 << 20                          # v7x (64 MiB) or unknown backend


def pos_encoding_forward(embed, pe, *, dropout_p=0.0, training=False, step=None, seed=0):
    """Pallas forward for PosEncoding.

    out = dropout(embed * sqrt(D) + pe[:S])             if not step
    out = dropout(embed * sqrt(D) + pe[step][None, :])  if step    (PyTorch truthiness)
    """
    B, S, D = embed.shape
    dtype = embed.dtype
    itemsize = jnp.dtype(dtype).itemsize
    scale = math.sqrt(D)
    # bf16 inputs: compute natively in bf16 (v6e/v7x VALU); otherwise f32 (v5e-safe).
    compute_dtype = jnp.bfloat16 if dtype == jnp.bfloat16 else jnp.float32
    target_bytes, vmem_cap = _vmem_budget()
    pack = {1: 32, 2: 16, 4: 8}.get(itemsize, 8)

    if step:  # NOTE: matches `if step:` truthiness in the reference (step=0 -> seq path)
        # Decode path: flatten batch*seq into rows, broadcast one PE row in-kernel.
        fold = _choose_fold(D, B * S)
        R, W = (B * S) // fold, D * fold
        x = embed.reshape(R, W)
        pe_op = jnp.tile(pe[step].astype(dtype), fold).reshape(1, W)
        TS = _choose_row_tile(R, W * itemsize, pack, target_bytes)
        grid = (pl.cdiv(R, TS), 1)
        pe_spec = pl.BlockSpec((1, W), lambda s, b, sref: (0, 0))
        io_spec = pl.BlockSpec((TS, W), lambda s, b, sref: (s, 0))
        out_shape = jax.ShapeDtypeStruct((R, W), dtype)
        rows_per_batch = R
        pe_rows = 1
    else:
        # Sequence path: fold along S only so PE tiles stay aligned with embed tiles.
        fold = _choose_fold(D, S)
        R, W = S // fold, D * fold
        x = embed.reshape(B, R, W)
        pe_op = pe[:S].astype(dtype).reshape(R, W)
        TS = _choose_row_tile(R, W * itemsize, pack, target_bytes)
        # Batch innermost -> PE block index constant across b -> PE stays VMEM-resident.
        grid = (pl.cdiv(R, TS), B)
        pe_spec = pl.BlockSpec((TS, W), lambda s, b, sref: (s, 0))
        io_spec = pl.BlockSpec((None, TS, W), lambda s, b, sref: (b, s, 0))
        out_shape = jax.ShapeDtypeStruct((B, R, W), dtype)
        rows_per_batch = R
        pe_rows = min(TS, R)

    # Explicit VMEM bound: double-buffered embed-in + out + pe blocks, with headroom.
    blk = TS * W * itemsize
    need = 2 * blk + 2 * blk + 2 * pe_rows * W * itemsize
    vmem_limit = int(min(max(4 * need, 32 << 20), vmem_cap))

    kernel = functools.partial(
        _pos_enc_kernel,
        scale=scale,
        dropout_p=float(dropout_p),
        training=bool(training),
        rows_per_batch=rows_per_batch,
        compute_dtype=compute_dtype,
    )
    seed_arr = jnp.array([seed], dtype=jnp.int32)

    out = pl.pallas_call(
        kernel,
        out_shape=out_shape,
        grid_spec=pltpu.PrefetchScalarGridSpec(
            num_scalar_prefetch=1,                    # dropout seed lives in SMEM
            grid=grid,
            in_specs=[pe_spec, io_spec],
            out_specs=io_spec,
        ),
        compiler_params=pltpu.CompilerParams(
            dimension_semantics=("parallel", "arbitrary"),
            vmem_limit_bytes=vmem_limit,
        ),
    )(seed_arr, pe_op, x)
    return out.reshape(B, S, D)


if __name__ == "__main__":
    D, MAXLEN = 32, 128
    dropout_p = 0.1
    key = jax.random.PRNGKey(0)
    k1, k2 = jax.random.split(key)
    pe = make_pe(MAXLEN, D)

    # --- eval mode, sequence path (B=2, S=8) ---
    B, S = 2, 8
    embed = jax.random.normal(k1, (B, S, D), dtype=jnp.float32)
    out = jax.block_until_ready(
        pos_encoding_forward(embed, pe, dropout_p=dropout_p, training=False)
    )
    ref = embed * math.sqrt(D) + pe[:S][None, :, :]
    assert jnp.allclose(out, ref, atol=1e-5, rtol=1e-5), "sequence path mismatch"

    # --- eval mode, decode-step path ---
    step = 3
    out_step = jax.block_until_ready(
        pos_encoding_forward(embed, pe, dropout_p=dropout_p, training=False, step=step)
    )
    ref_step = embed * math.sqrt(D) + pe[step][None, None, :]
    assert jnp.allclose(out_step, ref_step, atol=1e-5, rtol=1e-5), "step path mismatch"

    # --- training mode (dropout active) at a slightly larger S ---
    Bt, St = 2, 64
    embed_tr = jax.random.normal(k2, (Bt, St, D), dtype=jnp.float32)
    out_tr = jax.block_until_ready(
        pos_encoding_forward(embed_tr, pe, dropout_p=dropout_p, training=True, seed=1234)
    )
    ref_tr = embed_tr * math.sqrt(D) + pe[:St][None, :, :]
    scaled = ref_tr / (1.0 - dropout_p)
    is_zero = out_tr == 0.0
    is_scaled = jnp.isclose(out_tr, scaled, atol=1e-5, rtol=1e-5)
    assert bool(jnp.all(is_zero | is_scaled)), "dropout structural mismatch"
    frac = float(jnp.mean(is_zero.astype(jnp.float32)))
    assert 0.02 < frac < 0.25, f"dropout drop-fraction implausible: {frac}"

    print("KERNEL_OK")
</pallas_src>

<mosaic_0001>
module attributes {stable_mosaic.version = 11 : i64} {
  func.func @_pos_enc_kernel(%arg0: i32, %arg1: i32, %arg2: memref<1xi32, #tpu.memory_space<smem>>, %arg3: memref<2x128xf32, #tpu.memory_space<vmem>>, %arg4: memref<1x2x128xf32, #tpu.memory_space<vmem>>, %arg5: memref<1x2x128xf32, #tpu.memory_space<vmem>>) attributes {dimension_semantics = [#tpu.dimension_semantics<parallel>, #tpu.dimension_semantics<arbitrary>], iteration_bounds = array<i64: 1, 2>, scalar_prefetch = 1 : i64, scratch_operands = 0 : i64, tpu.core_type = #tpu.core_type<tc>, window_params = [{transform_indices = @transform_0, window_bounds = array<i64: 2, 128>}, {transform_indices = @transform_1, window_bounds = array<i64: 1, 2, 128>}, {transform_indices = @transform_2, window_bounds = array<i64: 1, 2, 128>}]} {
    %c0 = arith.constant 0 : index
    %c0_0 = arith.constant 0 : index
    %c0_1 = arith.constant 0 : index
    %0 = vector.load %arg4[%c0, %c0_0, %c0_1] : memref<1x2x128xf32, #tpu.memory_space<vmem>>, vector<1x2x128xf32>
    %1 = vector.shape_cast %0 : vector<1x2x128xf32> to vector<2x128xf32>
    %cst = arith.constant 5.65685415 : f32
    %2 = vector.broadcast %cst : f32 to vector<2x128xf32>
    %3 = arith.mulf %1, %2 : vector<2x128xf32>
    %c0_2 = arith.constant 0 : index
    %c0_3 = arith.constant 0 : index
    %4 = vector.load %arg3[%c0_2, %c0_3] : memref<2x128xf32, #tpu.memory_space<vmem>>, vector<2x128xf32>
    %5 = arith.addf %3, %4 : vector<2x128xf32>
    %c0_4 = arith.constant 0 : index
    %c0_5 = arith.constant 0 : index
    %c0_6 = arith.constant 0 : index
    %6 = vector.load %arg5[%c0_4, %c0_5, %c0_6] : memref<1x2x128xf32, #tpu.memory_space<vmem>>, vector<1x2x128xf32>
    %7 = vector.shape_cast %6 : vector<1x2x128xf32> to vector<2x128xf32>
    %8 = vector.shape_cast %5 : vector<2x128xf32> to vector<1x2x128xf32>
    tpu.vector_store %arg5[%c0_4, %c0_5, %c0_6], %8 {strides = array<i32>} : memref<1x2x128xf32, #tpu.memory_space<vmem>>, vector<1x2x128xf32>,
    return
  }
  func.func @transform_0(%arg0: i32, %arg1: i32, %arg2: memref<1xi32, #tpu.memory_space<smem>>) -> (i32, i32) {
    %c0_i32 = arith.constant 0 : i32
    %c0_i32_0 = arith.constant 0 : i32
    return %arg0, %c0_i32 : i32, i32
  }
  func.func @transform_1(%arg0: i32, %arg1: i32, %arg2: memref<1xi32, #tpu.memory_space<smem>>) -> (i32, i32, i32) {
    %c0_i32 = arith.constant 0 : i32
    %c0_i32_0 = arith.constant 0 : i32
    return %arg1, %arg0, %c0_i32 : i32, i32, i32
  }
  func.func @transform_2(%arg0: i32, %arg1: i32, %arg2: memref<1xi32, #tpu.memory_space<smem>>) -> (i32, i32, i32) {
    %c0_i32 = arith.constant 0 : i32
    %c0_i32_0 = arith.constant 0 : i32
    return %arg1, %arg0, %c0_i32 : i32, i32, i32
  }
}

</mosaic_0001>

<llo_original>
// kernel: tpu_custom_call.1
$region0: #{tpu_custom_call.1}
  #allocation0 [shape = 'u32[]', space=smem, size = 0x4, offset = 0x4, fixed_abs, tag = 'smem constant byte address 0x4 - core index']
  #allocation1 [shape = 'u32[144,128]{1,0:T(1,128)}', space=vmem, size = 0x12000, scoped, tag = 'internal scratch']
  #allocation2 [shape = 's32[1]{0}', space=sflag, size = 0x4, scoped, tag = 'scoped memory for tpu_custom_call.1']
  #allocation3 [shape = 's32[1]{0:T(128)S(6)}', space=smem, size = 0x200, scoped, tag = 'prefetched SMEM operand 0']
  %s0 = inlined_call_operand.<no memory space> [shape: s32[1], index: 0, kind: input, shape index: {}]
  %s1 = inlined_call_operand.vmem [shape: f32[2,128], index: 1, kind: input, shape index: {}]
  %s2 = inlined_call_operand.hbm [shape: f32[2,2,128], index: 2, kind: input, shape index: {}]
  %s3 = inlined_call_operand.hbm [shape: f32[2,2,128], index: 3, kind: output, shape index: {}]
  %s4 = sld [smem:[#allocation0]]
  $region45: #{tpu_custom_call.1} parent=0
    _
  %s6 = ssub.s32 1, %s4
  %s7 = scalar_select 0, %s6, %s4
  %8 = sst [smem:[#allocation3]] %s0
  $region1: #{tpu_custom_call.1} parent=0
    #allocation4 [shape = 'u8[2048]{0}', space=vmem, size = 0x800, scoped, tag = 'input window, operand 2']
    #allocation5 [shape = 's32[2]{0}', space=sflag, size = 0x8, scoped, tag = 'scoped memory for tpu_custom_call.1']
    #allocation6 [shape = 's32[2]{0}', space=sflag, size = 0x8, scoped, tag = 'scoped memory for tpu_custom_call.1']
    #allocation7 [shape = 'u8[2048]{0}', space=vmem, size = 0x800, scoped, tag = 'output window, operand 0']
    %9 = vsyncpa [#allocation5], 0
    %s10 = scalar_lea.sflag [#allocation5], 1
    %11 = vsyncpa %s10, 0
    %12 = vsyncpa [#allocation6], 0
    %s13 = scalar_lea.sflag [#allocation6], 1
    %14 = vsyncpa %s13, 0
    loop: start=0, step=1, limit=4
    $region2: #{tpu_custom_call.1} parent=1 // loop_pre_header
      _
    $region3: #{tpu_custom_call.1} parent=1 // loop_header
      %s16 = sphi 0, %s20
      %p17 = scmp.ge.s32.totalorder %s16, 4
      %s23 = sphi 0, %s35
      %s24 = sphi 0, %s31
      %s25 = sphi 0, %s23
      %s26 = sphi 0, %s24
      %s27 = sphi 0, %s25
      %s28 = sphi 0, %s26
      %s38 = sphi 0, %s40
      %s41 = sphi 0, %s38
      %s42 = sphi 0, %s41
      %s58 = sphi 0, %s42
      %s66 = sphi 0, %s68
      %s69 = sphi 0, %s66
      %s70 = sphi 0, %s69
      %s86 = sphi 0, %s70
      %s94 = sphi 0, %s96
      %s97 = sphi 0, %s94
      %s98 = sphi 0, %s97
      %s114 = sphi 0, %s98
    $region4: #{tpu_custom_call.1} parent=1 // loop_header_branch
      %19 = sbr.rel (%p17) target = $region8
    $region5: #{tpu_custom_call.1} parent=1 // loop_body
      %s21 = ssub.s32 %s16, 1
      %s22 = ssub.s32 %s16, 2
      %s29 = sadd.s32 1, %s24
      %p30 = scmp.ge.s32.totalorder %s29, 2
      %s31 = scalar_select %p30, 0, %s29
      %s32 = sadd.s32 1, %s23
      %s33 = scalar_select %p30, %s32, %s23
      %p34 = scmp.ge.s32.totalorder %s33, 1
      %s35 = scalar_select %p34, 0, %s33
      %s36 = ssub.s32 %s23, %s35
      %p37 = scmp.eq.s32.totalorder %s36, 0
      %s39 = sadd.s32 %s38, 1
      %s40 = scalar_select %p37, %s38, %s39
      %p43 = pneg %p37
      %p44 = scmp.eq.s32.totalorder %s16, 1
      %p45 = por %p43, %p44
      %p46 = scmp.ne.s32.totalorder %s38, %s41
      %p47 = scmp.eq.s32.totalorder %s16, 0
      %p48 = por %p46, %p47
      %p49 = scmp.ne.s32.totalorder %s38, %s41
      %p50 = scmp.eq.s32.totalorder %s21, 1
      %p51 = por %p49, %p50
      %p52 = scmp.ne.s32.totalorder %s41, %s42
      %p53 = scmp.eq.s32.totalorder %s21, 0
      %p54 = por %p52, %p53
      %p55 = scmp.ne.s32.totalorder %s41, %s42
      %p56 = scmp.eq.s32.totalorder %s22, 1
      %p57 = por %p55, %p56
      %p59 = scmp.ne.s32.totalorder %s42, %s58
      %p60 = scmp.eq.s32.totalorder %s22, 0
      %p61 = por %p59, %p60
      %s62 = ssub.s32 %s24, %s31
      %s63 = ssub.s32 %s23, %s35
      %s64 = sor.u32 %s62, %s63
      %p65 = scmp.eq.s32.totalorder %s64, 0
      %s67 = sadd.s32 %s66, 1
      %s68 = scalar_select %p65, %s66, %s67
      %p71 = pneg %p65
      %p72 = scmp.eq.s32.totalorder %s16, 1
      %p73 = por %p71, %p72
      %p74 = scmp.ne.s32.totalorder %s66, %s69
      %p75 = scmp.eq.s32.totalorder %s16, 0
      %p76 = por %p74, %p75
      %p77 = scmp.ne.s32.totalorder %s66, %s69
      %p78 = scmp.eq.s32.totalorder %s21, 1
      %p79 = por %p77, %p78
      %p80 = scmp.ne.s32.totalorder %s69, %s70
      %p81 = scmp.eq.s32.totalorder %s21, 0
      %p82 = por %p80, %p81
      %p83 = scmp.ne.s32.totalorder %s69, %s70
      %p84 = scmp.eq.s32.totalorder %s22, 1
      %p85 = por %p83, %p84
      %p87 = scmp.ne.s32.totalorder %s70, %s86
      %p88 = scmp.eq.s32.totalorder %s22, 0
      %p89 = por %p87, %p88
      %s90 = ssub.s32 %s24, %s31
      %s91 = ssub.s32 %s23, %s35
      %s92 = sor.u32 %s90, %s91
      %p93 = scmp.eq.s32.totalorder %s92, 0
      %s95 = sadd.s32 %s94, 1
      %s96 = scalar_select %p93, %s94, %s95
      %p99 = pneg %p93
      %p100 = scmp.eq.s32.totalorder %s16, 1
      %p101 = por %p99, %p100
      %p102 = scmp.ne.s32.totalorder %s94, %s97
      %p103 = scmp.eq.s32.totalorder %s16, 0
      %p104 = por %p102, %p103
      %p105 = scmp.ne.s32.totalorder %s94, %s97
      %p106 = scmp.eq.s32.totalorder %s21, 1
      %p107 = por %p105, %p106
      %p108 = scmp.ne.s32.totalorder %s97, %s98
      %p109 = scmp.eq.s32.totalorder %s21, 0
      %p110 = por %p108, %p109
      %p111 = scmp.ne.s32.totalorder %s97, %s98
      %p112 = scmp.eq.s32.totalorder %s22, 1
      %p113 = por %p111, %p112
      %p115 = scmp.ne.s32.totalorder %s98, %s114
      %p116 = scmp.eq.s32.totalorder %s22, 0
      %p117 = por %p115, %p116
      %p118 = scmp.le.s32.totalorder 1, %s16
      %p119 = scmp.lt.s32.totalorder %s16, 3
      %p120 = pnand %p118, %p119
      %p121 = pneg %p120
      // Predicated region
      $region9: #{tpu_custom_call.1} parent=5 // pred_check
        _
      $region10: #{tpu_custom_call.1} parent=5 // pred_check_branch
        %123 = sbr.rel (%p120) target = $region12
      $region11: #{tpu_custom_call.1} parent=5 // pred_region
        %s124 = ssub.s32 %s16, 1
        // Predicated region
        $region13: #{tpu_custom_call.1} parent=11 // pred_check
          %p125 = pneg %p54
        $region14: #{tpu_custom_call.1} parent=11 // pred_check_branch
          %127 = sbr.rel (%p125) target = $region16
        $region15: #{tpu_custom_call.1} parent=11 // pred_region
          %p128 = scmp.lt.s32.totalorder %s25, 0
          %s129 = scalar_select %p128, %s25, 0
          %s130 = smul.addr %s129, 2
          %s131 = scalar_lea.vmem %s1, %s130
        $region16: #{tpu_custom_call.1} parent=11 // pred_fallthru
          _
      $region12: #{tpu_custom_call.1} parent=5 // pred_fallthru
        _
      %p132 = scmp.lt.s32.totalorder %s16, 2
      // Predicated region
      $region17: #{tpu_custom_call.1} parent=5 // pred_check
        %p133 = pneg %p132
      $region18: #{tpu_custom_call.1} parent=5 // pred_check_branch
        %135 = sbr.rel (%p133) target = $region20
      $region19: #{tpu_custom_call.1} parent=5 // pred_region
        // Predicated region
        $region21: #{tpu_custom_call.1} parent=19 // pred_check
          %p136 = pneg %p76
        $region22: #{tpu_custom_call.1} parent=19 // pred_check_branch
          %138 = sbr.rel (%p136) target = $region24
        $region23: #{tpu_custom_call.1} parent=19 // pred_region
          %s139 = sand.u32 %s66, 1
          %s140 = scalar_lea.sflag [#allocation5], %s139
          %s141 = sand.u32 %s66, 1
          %s142 = smul.addr %s141, 2
          %s143 = scalar_lea.vmem [#allocation4], %s142
          %s145 = ssub.s32 32, 32
          %146 = vsyncadd %s140, %s145
          %s147 = sadd.s32 %s23, %s24
          %s148 = smul.addr %s147, 32
          %s149 = scalar_lea.hbm %s2, %s148
          %s151 = sshll.u32 %s143, 4
          %s152 = int_to_ptr.vmem [resolvable:$true] %s151
          %154 = dma.hbm_to_vmem [thread:$0]  %s149, 32, %s152, %s140
        $region24: #{tpu_custom_call.1} parent=19 // pred_fallthru
          _
      $region20: #{tpu_custom_call.1} parent=5 // pred_fallthru
        _
      %p155 = scmp.le.s32.totalorder 1, %s16
      %p156 = scmp.lt.s32.totalorder %s16, 3
      %p157 = pnand %p155, %p156
      %p158 = pneg %p157
      // Predicated region
      $region25: #{tpu_custom_call.1} parent=5 // pred_check
        _
      $region26: #{tpu_custom_call.1} parent=5 // pred_check_branch
        %160 = sbr.rel (%p157) target = $region28
      $region27: #{tpu_custom_call.1} parent=5 // pred_region
        %s161 = ssub.s32 %s16, 1
        %s162 = sand.u32 %s69, 1
        %s163 = scalar_lea.sflag [#allocation5], %s162
        %s164 = sand.u32 %s69, 1
        %s165 = smul.addr %s164, 2
        %s166 = scalar_lea.vmem [#allocation4], %s165
        // Predicated region
        $region29: #{tpu_custom_call.1} parent=27 // pred_check
          %p167 = pneg %p82
        $region30: #{tpu_custom_call.1} parent=27 // pred_check_branch
          %169 = sbr.rel (%p167) target = $region32
        $region31: #{tpu_custom_call.1} parent=27 // pred_region
          %170 = dma.done %s163, 32
        $region32: #{tpu_custom_call.1} parent=27 // pred_fallthru
          _
        %p171 = scmp.lt.s32.totalorder %s25, 0
        %s172 = scalar_select %p171, %s25, 0
        %s173 = smul.addr %s172, 2
        %s174 = scalar_lea.vmem %s1, %s173
        %p175 = pneg %p54
        %p176 = pneg %p51
        %s177 = sand.u32 %s69, 1
        %s178 = scalar_lea.sflag [#allocation5], %s177
        %s179 = sand.u32 %s69, 1
        %s180 = smul.addr %s179, 2
        %s181 = scalar_lea.vmem [#allocation4], %s180
        %p182 = pneg %p82
        %p183 = pneg %p79
        %p184 = pneg %p110
        %p185 = pneg %p107
        %s186 = sand.u32 %s97, 1
        %s187 = scalar_lea.sflag [#allocation6], %s186
        %s188 = sand.u32 %s97, 1
        %s189 = smul.addr %s188, 2
        %s190 = scalar_lea.vmem [#allocation7], %s189
        %p191 = scmp.lt.s32.totalorder %s25, 0
        %s192 = scalar_select %p191, %s25, 0
        %s193 = smul.addr %s192, 2
        %s194 = scalar_lea.vmem %s1, %s193
        %v195 = vld [vmem:[%s166] sm:$0x3]
        %v196 = vmul.f32 %v195, 5.656854
        %v197 = vld [vmem:[%s194] sm:$0x3]
        %v198 = vadd.f32 %v196, %v197
        %199 = vst [vmem:[%s190] sm:$0x3] %v198
        %s200 = sand.u32 %s97, 1
        %s201 = scalar_lea.sflag [#allocation6], %s200
        %s202 = sand.u32 %s97, 1
        %s203 = smul.addr %s202, 2
        %s204 = scalar_lea.vmem [#allocation7], %s203
        // Predicated region
        $region33: #{tpu_custom_call.1} parent=27 // pred_check
          %p205 = pneg %p107
        $region34: #{tpu_custom_call.1} parent=27 // pred_check_branch
          %207 = sbr.rel (%p205) target = $region36
        $region35: #{tpu_custom_call.1} parent=27 // pred_region
          %s209 = ssub.s32 32, 32
          %210 = vsyncadd %s201, %s209
          %s211 = sadd.s32 %s25, %s26
          %s212 = smul.addr %s211, 32
          %s213 = scalar_lea.hbm %s3, %s212
          %s215 = sshll.u32 %s204, 4
          %s216 = int_to_ptr.vmem [resolvable:$true] %s215
          %218 = dma.vmem_to_hbm [thread:$0]  %s216, 32, %s213, %s201
        $region36: #{tpu_custom_call.1} parent=27 // pred_fallthru
          _
      $region28: #{tpu_custom_call.1} parent=5 // pred_fallthru
        _
      %p219 = scmp.le.s32.totalorder 2, %s16
      // Predicated region
      $region37: #{tpu_custom_call.1} parent=5 // pred_check
        %p220 = pneg %p219
      $region38: #{tpu_custom_call.1} parent=5 // pred_check_branch
        %222 = sbr.rel (%p220) target = $region40
      $region39: #{tpu_custom_call.1} parent=5 // pred_region
        %s223 = ssub.s32 %s16, 2
        // Predicated region
        $region41: #{tpu_custom_call.1} parent=39 // pred_check
          %p224 = pneg %p113
        $region42: #{tpu_custom_call.1} parent=39 // pred_check_branch
          %226 = sbr.rel (%p224) target = $region44
        $region43: #{tpu_custom_call.1} parent=39 // pred_region
          %s227 = sand.u32 %s98, 1
          %s228 = scalar_lea.sflag [#allocation6], %s227
          %s229 = sand.u32 %s98, 1
          %s230 = smul.addr %s229, 2
          %s231 = scalar_lea.vmem [#allocation7], %s230
          %232 = dma.done %s228, 32
        $region44: #{tpu_custom_call.1} parent=39 // pred_fallthru
          _
      $region40: #{tpu_custom_call.1} parent=5 // pred_fallthru
        _
    $region6: #{tpu_custom_call.1} parent=1 // loop_footer
      %s20 = sadd.s32 1, %s16
    $region7: #{tpu_custom_call.1} parent=1 // loop_footer_branch
      %15 = sbr.rel target = $region3
    $region8: #{tpu_custom_call.1} parent=1 // loop_exit
      _
    %233 = vsyncpa [#allocation5], 1
    %s234 = scalar_lea.sflag [#allocation5], 1
    %235 = vsyncpa %s234, 1
    %236 = vsyncpa [#allocation6], 1
    %s237 = scalar_lea.sflag [#allocation6], 1
    %238 = vsyncpa %s237, 1

</llo_original>
